<compile_context>
chip_gen: v6e
topology: v6e:2x2x1
jax: 0.10.0
libtpu: 0.0.40
codegen_flags: <defaults>
</compile_context>

<pallas_src>
import functools

import jax
import jax.numpy as jnp
from jax.experimental import pallas as pl
from jax.experimental.pallas import tpu as pltpu


def _skipconv_kernel(xflat_ref, w_ref, skip_ref, mask_ref, o_ref,
                     acc_ref, slab_ref, *,
                     Wp, KH, KW, Lh, cin_p, tc, ct_total, n_htiles,
                     weight_resident, inv_n, eps):
    # xflat_ref: (1, cin_p, Fpad)   flat reflect-padded image (model dtype)
    # w_ref:     (Cout, KT*cin_p) if weight_resident else (tc, KT*cin_p)
    # skip_ref:  (1, tc, Lout)      skip in the wide flat-spatial frame
    # mask_ref:  (1, Lout) f32      1.0 on valid columns, 0.0 on junk columns
    # o_ref:     (1, tc, Lout)
    # acc_ref:   (tc, Lout) f32     conv accumulator (dummy (8,128) if HT == 1)
    # slab_ref:  (KT*cin_p, Lh)     im2col scratch in the model dtype
    ct = pl.program_id(1)

    if n_htiles > 1:
        ht = pl.program_id(2)
        p0 = ht * Lh                      # first wide-frame column of this tile
    else:
        p0 = 0                            # static -> fully static slices below

    # --- im2col slab: every conv tap is a lane-shifted slice of the flat image.
    # Rows stay in the model dtype (bf16-friendly MXU operand); cin_p % 8 == 0
    # keeps every tap's store sublane-aligned.
    for kh in range(KH):
        for kw in range(KW):
            t = kh * KW + kw
            off = kh * Wp + kw
            if n_htiles > 1:
                src = xflat_ref[0, :, pl.ds(p0 + off, Lh)]
            else:
                src = xflat_ref[0, :, off:off + Lh]
            slab_ref[t * cin_p:(t + 1) * cin_p, :] = src

    # --- Cout-tile of the (possibly fully VMEM-resident) weight matrix.
    if weight_resident and ct_total > 1:
        w_tile = w_ref[pl.ds(pl.multiple_of(ct * tc, tc), tc), :]
    else:
        w_tile = w_ref[...]

    # --- one MXU matmul per step; operands in model dtype, f32 accumulation.
    chunk = jnp.dot(w_tile, slab_ref[...], preferred_element_type=jnp.float32)

    if n_htiles > 1:
        acc_ref[:, pl.ds(p0, Lh)] = chunk

    # --- fused InstanceNorm + skip-add + LeakyReLU(0.2) epilogue.
    def epilogue(acc):
        maskf = mask_ref[...]                                        # (1, Lout)
        mean = jnp.sum(acc * maskf, axis=1, keepdims=True) * inv_n
        centered = acc - mean                                        # two-pass var
        var = jnp.sum(centered * centered * maskf, axis=1, keepdims=True) * inv_n
        inv_std = jax.lax.rsqrt(var + eps)
        y = centered * inv_std + skip_ref[0].astype(jnp.float32)
        o_ref[0] = jnp.maximum(y, 0.2 * y).astype(o_ref.dtype)

    if n_htiles > 1:
        @pl.when(pl.program_id(2) == n_htiles - 1)
        def _():
            epilogue(acc_ref[...])
    else:
        epilogue(chunk)


def _divisors_desc(n):
    return [d for d in range(n, 0, -1) if n % d == 0]


def skip_conv2d(x_nchw, skip_nchw, weight_oihw, *, eps=1e-5):
    """Forward of SkipConv2D: LeakyReLU(InstanceNorm(conv_reflect(x)) + skip)."""
    N, Cin, H, W = x_nchw.shape
    Cout, Cin2, KH, KW = weight_oihw.shape
    assert Cin2 == Cin
    assert KH % 2 == 1 and KW % 2 == 1, "padding='same' assumed with odd kernel"
    ph, pw = (KH - 1) // 2, (KW - 1) // 2
    Hp, Wp = H + 2 * ph, W + 2 * pw
    F = Hp * Wp
    Lout = H * Wp                      # wide output frame: Wp columns per row
    KT = KH * KW
    cin_p = ((Cin + 7) // 8) * 8       # sublane-aligned slab rows
    Kd = KT * cin_p
    Fpad = F + (KW - 1)                # zero tail so every tap slice is in bounds

    dtype = x_nchw.dtype
    itemsize = jnp.dtype(dtype).itemsize
    sk_itemsize = jnp.dtype(skip_nchw.dtype).itemsize

    # ---- wrapper glue (one pass each): reflect pad + flatten x, widen skip,
    #      flatten weight tap-major (ci fastest), build the validity mask.
    xpad = jnp.pad(x_nchw, ((0, 0), (0, 0), (ph, ph), (pw, pw)), mode="reflect")
    if cin_p != Cin:
        xpad = jnp.pad(xpad, ((0, 0), (0, cin_p - Cin), (0, 0), (0, 0)))
    xflat = xpad.reshape(N, cin_p, F)
    if Fpad != F:
        xflat = jnp.pad(xflat, ((0, 0), (0, 0), (0, Fpad - F)))

    w_mat = jnp.transpose(weight_oihw, (0, 2, 3, 1))           # (Cout, KH, KW, Cin)
    if cin_p != Cin:
        w_mat = jnp.pad(w_mat, ((0, 0), (0, 0), (0, 0), (0, cin_p - Cin)))
    w_mat = w_mat.reshape(Cout, Kd).astype(dtype)              # MXU operand dtype

    skip_wide = skip_nchw
    if Wp != W:
        skip_wide = jnp.pad(skip_nchw, ((0, 0), (0, 0), (0, 0), (0, Wp - W)))
    skip_wide = skip_wide.reshape(N, Cout, Lout)

    mask = (jnp.arange(Lout, dtype=jnp.int32) % Wp < W)
    mask = mask.astype(jnp.float32).reshape(1, Lout)

    # ---- device-aware tiling (TC = Cout tile, Ht = rows per step).
    try:
        vmem_cap = int(pltpu.get_tpu_info().vmem_capacity_bytes)
    except Exception:
        vmem_cap = 64 << 20                                    # conservative (v7x)
    try:
        kind = jax.devices()[0].device_kind.lower()
    except Exception:
        kind = ""
    tc_max = 256 if ("v6" in kind and vmem_cap >= (100 << 20)) else 128

    w_full_bytes = Cout * Kd * itemsize
    weight_resident = w_full_bytes <= (4 << 20)

    def vmem_need(tc, ht):
        lh = ht * Wp
        need = 0
        need += 2 * cin_p * Fpad * itemsize                     # x block (2 bufs)
        need += w_full_bytes if weight_resident else 2 * tc * Kd * itemsize
        need += 2 * tc * Lout * sk_itemsize                     # skip block
        need += 2 * tc * Lout * itemsize                        # out block
        need += 2 * Lout * 4                                    # mask block
        need += (tc * Lout * 4 if ht < H else 8 * 128 * 4)      # acc scratch
        need += Kd * lh * itemsize                              # im2col slab
        need += 4 * tc * Lout * 4                               # epilogue f32 temps
        return need + (4 << 20)

    budget = int(vmem_cap * 0.85)
    tc_cands = [d for d in _divisors_desc(Cout)
                if d <= tc_max and (d == Cout or d % 8 == 0)]
    if not tc_cands:
        tc_cands = [Cout]
    ht_cands = _divisors_desc(H)
    TC, Ht = tc_cands[-1], ht_cands[-1]
    done = False
    for tc in tc_cands:
        for ht in ht_cands:
            if vmem_need(tc, ht) <= budget:
                TC, Ht = tc, ht
                done = True
                break
        if done:
            break
    # TODO(synk): if even (TC=min, Ht=1) overflows VMEM (huge Cin*W), add a
    # Cin-tiling grid axis that accumulates partial conv products into acc_ref.

    CT, HT = Cout // TC, H // Ht
    Lh = Ht * Wp
    if weight_resident and CT > 1 and TC % 8 != 0:
        weight_resident = False        # keep the in-kernel weight slice aligned

    vmem_limit = int(min(max(vmem_need(TC, Ht) + (8 << 20), 32 << 20),
                         int(vmem_cap * 0.9)))

    kernel = functools.partial(
        _skipconv_kernel, Wp=Wp, KH=KH, KW=KW, Lh=Lh, cin_p=cin_p, tc=TC,
        ct_total=CT, n_htiles=HT, weight_resident=weight_resident,
        inv_n=1.0 / float(H * W), eps=float(eps))

    if weight_resident:
        w_spec = pl.BlockSpec((Cout, Kd), lambda n, c, h: (0, 0))   # fetched once
    else:
        w_spec = pl.BlockSpec((TC, Kd), lambda n, c, h: (c, 0))

    acc_shape = (TC, Lout) if HT > 1 else (8, 128)                  # dummy if HT==1

    out_wide = pl.pallas_call(
        kernel,
        out_shape=jax.ShapeDtypeStruct((N, Cout, Lout), dtype),
        grid_spec=pltpu.PrefetchScalarGridSpec(
            num_scalar_prefetch=0,
            grid=(N, CT, HT),
            in_specs=[
                pl.BlockSpec((1, cin_p, Fpad), lambda n, c, h: (n, 0, 0)),
                w_spec,
                pl.BlockSpec((1, TC, Lout), lambda n, c, h: (n, c, 0)),
                pl.BlockSpec((1, Lout), lambda n, c, h: (0, 0)),
            ],
            out_specs=pl.BlockSpec((1, TC, Lout), lambda n, c, h: (n, c, 0)),
            scratch_shapes=[pltpu.VMEM(acc_shape, jnp.float32),
                            pltpu.VMEM((Kd, Lh), dtype)],
        ),
        compiler_params=pltpu.CompilerParams(
            dimension_semantics=("parallel", "parallel", "arbitrary"),
            vmem_limit_bytes=vmem_limit),
    )(xflat, w_mat, skip_wide, mask)

    # glue: drop the (Wp - W) junk columns per row -> dense NCHW output.
    return out_wide.reshape(N, Cout, H, Wp)[:, :, :, :W]


def _reference(x_nchw, skip_nchw, weight_oihw, eps=1e-5):
    """Pure-JAX reference of the same forward (for a sanity check)."""
    Cout, _, KH, KW = weight_oihw.shape
    ph, pw = (KH - 1) // 2, (KW - 1) // 2
    xpad = jnp.pad(x_nchw, ((0, 0), (0, 0), (ph, ph), (pw, pw)), mode="reflect")
    y = jax.lax.conv_general_dilated(
        xpad, weight_oihw, window_strides=(1, 1), padding="VALID",
        dimension_numbers=("NCHW", "OIHW", "NCHW"))
    mean = jnp.mean(y, axis=(2, 3), keepdims=True)
    var = jnp.mean((y - mean) ** 2, axis=(2, 3), keepdims=True)
    y = (y - mean) * jax.lax.rsqrt(var + eps)
    y = y + skip_nchw
    return jnp.where(y >= 0, y, 0.2 * y)


if __name__ == "__main__":
    # Small deterministic setup consistent with the module:
    # in_channels=4, out_channels=4, kernel=3, batch=2, spatial=16x16.
    N, Cin, Cout, H, W, K = 2, 4, 4, 16, 16, 3

    key = jax.random.PRNGKey(0)
    kx, ks, kw = jax.random.split(key, 3)
    x = jax.random.normal(kx, (N, Cin, H, W), dtype=jnp.float32)
    skip = jax.random.normal(ks, (N, Cout, H, W), dtype=jnp.float32)
    fan_in = Cin * K * K
    bound = 1.0 / jnp.sqrt(fan_in)
    weight = jax.random.uniform(kw, (Cout, Cin, K, K),
                                minval=-bound, maxval=bound, dtype=jnp.float32)

    out = skip_conv2d(x, skip, weight)
    out = jax.block_until_ready(out)

    ref = _reference(x, skip, weight)
    assert out.shape == (N, Cout, H, W)
    assert jnp.allclose(out, ref, atol=2e-3, rtol=2e-3)

    print("KERNEL_OK")
</pallas_src>

<mosaic_0001>
module attributes {stable_mosaic.version = 11 : i64} {
  func.func @_skipconv_kernel(%arg0: i32, %arg1: i32, %arg2: i32, %arg3: memref<1x8x326xf32, #tpu.memory_space<vmem>>, %arg4: memref<4x72xf32, #tpu.memory_space<vmem>>, %arg5: memref<1x4x288xf32, #tpu.memory_space<vmem>>, %arg6: memref<1x288xf32, #tpu.memory_space<vmem>>, %arg7: memref<1x4x288xf32, #tpu.memory_space<vmem>>, %arg8: memref<8x128xf32, #tpu.memory_space<vmem>>, %arg9: memref<72x288xf32, #tpu.memory_space<vmem>>) attributes {dimension_semantics = [#tpu.dimension_semantics<parallel>, #tpu.dimension_semantics<parallel>, #tpu.dimension_semantics<arbitrary>], iteration_bounds = array<i64: 2, 1, 1>, scalar_prefetch = 0 : i64, scratch_operands = 2 : i64, tpu.core_type = #tpu.core_type<tc>, window_params = [{transform_indices = @transform_0, window_bounds = array<i64: 1, 8, 326>}, {pipeline_mode = #tpu.pipeline_mode<synchronous>, transform_indices = @transform_1, window_bounds = array<i64: 4, 72>}, {transform_indices = @transform_2, window_bounds = array<i64: 1, 4, 288>}, {pipeline_mode = #tpu.pipeline_mode<synchronous>, transform_indices = @transform_3, window_bounds = array<i64: 1, 288>}, {transform_indices = @transform_4, window_bounds = array<i64: 1, 4, 288>}]} {
    %c0 = arith.constant 0 : index
    %c0_0 = arith.constant 0 : index
    %c0_1 = arith.constant 0 : index
    %0 = vector.load %arg3[%c0, %c0_0, %c0_1] : memref<1x8x326xf32, #tpu.memory_space<vmem>>, vector<1x8x288xf32>
    %1 = vector.shape_cast %0 : vector<1x8x288xf32> to vector<8x288xf32>
    %c0_2 = arith.constant 0 : index
    %c0_3 = arith.constant 0 : index
    %2 = vector.load %arg9[%c0_2, %c0_3] : memref<72x288xf32, #tpu.memory_space<vmem>>, vector<8x288xf32>
    tpu.vector_store %arg9[%c0_2, %c0_3], %1 {strides = array<i32>} : memref<72x288xf32, #tpu.memory_space<vmem>>, vector<8x288xf32>,
    %c0_4 = arith.constant 0 : index
    %c0_5 = arith.constant 0 : index
    %c1 = arith.constant 1 : index
    %3 = vector.load %arg3[%c0_4, %c0_5, %c1] : memref<1x8x326xf32, #tpu.memory_space<vmem>>, vector<1x8x288xf32>
    %4 = vector.shape_cast %3 : vector<1x8x288xf32> to vector<8x288xf32>
    %c8 = arith.constant 8 : index
    %c0_6 = arith.constant 0 : index
    %5 = vector.load %arg9[%c8, %c0_6] : memref<72x288xf32, #tpu.memory_space<vmem>>, vector<8x288xf32>
    tpu.vector_store %arg9[%c8, %c0_6], %4 {strides = array<i32>} : memref<72x288xf32, #tpu.memory_space<vmem>>, vector<8x288xf32>,
    %c0_7 = arith.constant 0 : index
    %c0_8 = arith.constant 0 : index
    %c2 = arith.constant 2 : index
    %6 = vector.load %arg3[%c0_7, %c0_8, %c2] : memref<1x8x326xf32, #tpu.memory_space<vmem>>, vector<1x8x288xf32>
    %7 = vector.shape_cast %6 : vector<1x8x288xf32> to vector<8x288xf32>
    %c16 = arith.constant 16 : index
    %c0_9 = arith.constant 0 : index
    %8 = vector.load %arg9[%c16, %c0_9] : memref<72x288xf32, #tpu.memory_space<vmem>>, vector<8x288xf32>
    tpu.vector_store %arg9[%c16, %c0_9], %7 {strides = array<i32>} : memref<72x288xf32, #tpu.memory_space<vmem>>, vector<8x288xf32>,
    %c0_10 = arith.constant 0 : index
    %c0_11 = arith.constant 0 : index
    %c18 = arith.constant 18 : index
    %9 = vector.load %arg3[%c0_10, %c0_11, %c18] : memref<1x8x326xf32, #tpu.memory_space<vmem>>, vector<1x8x288xf32>
    %10 = vector.shape_cast %9 : vector<1x8x288xf32> to vector<8x288xf32>
    %c24 = arith.constant 24 : index
    %c0_12 = arith.constant 0 : index
    %11 = vector.load %arg9[%c24, %c0_12] : memref<72x288xf32, #tpu.memory_space<vmem>>, vector<8x288xf32>
    tpu.vector_store %arg9[%c24, %c0_12], %10 {strides = array<i32>} : memref<72x288xf32, #tpu.memory_space<vmem>>, vector<8x288xf32>,
    %c0_13 = arith.constant 0 : index
    %c0_14 = arith.constant 0 : index
    %c19 = arith.constant 19 : index
    %12 = vector.load %arg3[%c0_13, %c0_14, %c19] : memref<1x8x326xf32, #tpu.memory_space<vmem>>, vector<1x8x288xf32>
    %13 = vector.shape_cast %12 : vector<1x8x288xf32> to vector<8x288xf32>
    %c32 = arith.constant 32 : index
    %c0_15 = arith.constant 0 : index
    %14 = vector.load %arg9[%c32, %c0_15] : memref<72x288xf32, #tpu.memory_space<vmem>>, vector<8x288xf32>
    tpu.vector_store %arg9[%c32, %c0_15], %13 {strides = array<i32>} : memref<72x288xf32, #tpu.memory_space<vmem>>, vector<8x288xf32>,
    %c0_16 = arith.constant 0 : index
    %c0_17 = arith.constant 0 : index
    %c20 = arith.constant 20 : index
    %15 = vector.load %arg3[%c0_16, %c0_17, %c20] : memref<1x8x326xf32, #tpu.memory_space<vmem>>, vector<1x8x288xf32>
    %16 = vector.shape_cast %15 : vector<1x8x288xf32> to vector<8x288xf32>
    %c40 = arith.constant 40 : index
    %c0_18 = arith.constant 0 : index
    %17 = vector.load %arg9[%c40, %c0_18] : memref<72x288xf32, #tpu.memory_space<vmem>>, vector<8x288xf32>
    tpu.vector_store %arg9[%c40, %c0_18], %16 {strides = array<i32>} : memref<72x288xf32, #tpu.memory_space<vmem>>, vector<8x288xf32>,
    %c0_19 = arith.constant 0 : index
    %c0_20 = arith.constant 0 : index
    %c36 = arith.constant 36 : index
    %18 = vector.load %arg3[%c0_19, %c0_20, %c36] : memref<1x8x326xf32, #tpu.memory_space<vmem>>, vector<1x8x288xf32>
    %19 = vector.shape_cast %18 : vector<1x8x288xf32> to vector<8x288xf32>
    %c48 = arith.constant 48 : index
    %c0_21 = arith.constant 0 : index
    %20 = vector.load %arg9[%c48, %c0_21] : memref<72x288xf32, #tpu.memory_space<vmem>>, vector<8x288xf32>
    tpu.vector_store %arg9[%c48, %c0_21], %19 {strides = array<i32>} : memref<72x288xf32, #tpu.memory_space<vmem>>, vector<8x288xf32>,
    %c0_22 = arith.constant 0 : index
    %c0_23 = arith.constant 0 : index
    %c37 = arith.constant 37 : index
    %21 = vector.load %arg3[%c0_22, %c0_23, %c37] : memref<1x8x326xf32, #tpu.memory_space<vmem>>, vector<1x8x288xf32>
    %22 = vector.shape_cast %21 : vector<1x8x288xf32> to vector<8x288xf32>
    %c56 = arith.constant 56 : index
    %c0_24 = arith.constant 0 : index
    %23 = vector.load %arg9[%c56, %c0_24] : memref<72x288xf32, #tpu.memory_space<vmem>>, vector<8x288xf32>
    tpu.vector_store %arg9[%c56, %c0_24], %22 {strides = array<i32>} : memref<72x288xf32, #tpu.memory_space<vmem>>, vector<8x288xf32>,
    %c0_25 = arith.constant 0 : index
    %c0_26 = arith.constant 0 : index
    %c38 = arith.constant 38 : index
    %24 = vector.load %arg3[%c0_25, %c0_26, %c38] : memref<1x8x326xf32, #tpu.memory_space<vmem>>, vector<1x8x288xf32>
    %25 = vector.shape_cast %24 : vector<1x8x288xf32> to vector<8x288xf32>
    %c64 = arith.constant 64 : index
    %c0_27 = arith.constant 0 : index
    %26 = vector.load %arg9[%c64, %c0_27] : memref<72x288xf32, #tpu.memory_space<vmem>>, vector<8x288xf32>
    tpu.vector_store %arg9[%c64, %c0_27], %25 {strides = array<i32>} : memref<72x288xf32, #tpu.memory_space<vmem>>, vector<8x288xf32>,
    %c0_28 = arith.constant 0 : index
    %c0_29 = arith.constant 0 : index
    %27 = vector.load %arg4[%c0_28, %c0_29] : memref<4x72xf32, #tpu.memory_space<vmem>>, vector<4x72xf32>
    %c0_30 = arith.constant 0 : index
    %c0_31 = arith.constant 0 : index
    %28 = vector.load %arg9[%c0_30, %c0_31] : memref<72x288xf32, #tpu.memory_space<vmem>>, vector<72x288xf32>
    %cst = arith.constant dense<0.000000e+00> : vector<4x288xf32>
    %29 = tpu.matmul %27, %28, %cst {dimension_numbers = #tpu.dot_dimension_numbers<[1], [0], [0], [1], [0, 0, 1, 1], [], []>} : vector<4x72xf32>, vector<72x288xf32>, vector<4x288xf32> -> vector<4x288xf32>
    %c0_32 = arith.constant 0 : index
    %c0_33 = arith.constant 0 : index
    %30 = vector.load %arg6[%c0_32, %c0_33] : memref<1x288xf32, #tpu.memory_space<vmem>>, vector<1x288xf32>
    %31 = vector.broadcast %30 : vector<1x288xf32> to vector<4x288xf32>
    %32 = arith.mulf %29, %31 : vector<4x288xf32>
    %cst_34 = arith.constant dense<0.000000e+00> : vector<4xf32>
    %33 = vector.multi_reduction <add>, %32, %cst_34 [1] : vector<4x288xf32> to vector<4xf32>
    %34 = vector.shape_cast %33 : vector<4xf32> to vector<4x1xf32>
    %cst_35 = arith.constant 3.906250e-03 : f32
    %35 = vector.broadcast %cst_35 : f32 to vector<4x1xf32>
    %36 = arith.mulf %34, %35 : vector<4x1xf32>
    %37 = vector.broadcast %36 : vector<4x1xf32> to vector<4x288xf32>
    %38 = arith.subf %29, %37 : vector<4x288xf32>
    %39 = arith.mulf %38, %38 : vector<4x288xf32>
    %40 = vector.broadcast %30 : vector<1x288xf32> to vector<4x288xf32>
    %41 = arith.mulf %39, %40 : vector<4x288xf32>
    %cst_36 = arith.constant dense<0.000000e+00> : vector<4xf32>
    %42 = vector.multi_reduction <add>, %41, %cst_36 [1] : vector<4x288xf32> to vector<4xf32>
    %43 = vector.shape_cast %42 : vector<4xf32> to vector<4x1xf32>
    %cst_37 = arith.constant 3.906250e-03 : f32
    %44 = vector.broadcast %cst_37 : f32 to vector<4x1xf32>
    %45 = arith.mulf %43, %44 : vector<4x1xf32>
    %cst_38 = arith.constant 9.99999974E-6 : f32
    %46 = vector.broadcast %cst_38 : f32 to vector<4x1xf32>
    %47 = arith.addf %45, %46 : vector<4x1xf32>
    %48 = math.rsqrt %47 : vector<4x1xf32>
    %49 = vector.broadcast %48 : vector<4x1xf32> to vector<4x288xf32>
    %50 = arith.mulf %38, %49 : vector<4x288xf32>
    %c0_39 = arith.constant 0 : index
    %c0_40 = arith.constant 0 : index
    %c0_41 = arith.constant 0 : index
    %51 = vector.load %arg5[%c0_39, %c0_40, %c0_41] : memref<1x4x288xf32, #tpu.memory_space<vmem>>, vector<1x4x288xf32>
    %52 = vector.shape_cast %51 : vector<1x4x288xf32> to vector<4x288xf32>
    %53 = arith.addf %50, %52 : vector<4x288xf32>
    %cst_42 = arith.constant 2.000000e-01 : f32
    %54 = vector.broadcast %cst_42 : f32 to vector<4x288xf32>
    %55 = arith.mulf %54, %53 : vector<4x288xf32>
    %56 = arith.maximumf %53, %55 : vector<4x288xf32>
    %c0_43 = arith.constant 0 : index
    %c0_44 = arith.constant 0 : index
    %c0_45 = arith.constant 0 : index
    %57 = vector.load %arg7[%c0_43, %c0_44, %c0_45] : memref<1x4x288xf32, #tpu.memory_space<vmem>>, vector<1x4x288xf32>
    %58 = vector.shape_cast %57 : vector<1x4x288xf32> to vector<4x288xf32>
    %59 = vector.shape_cast %56 : vector<4x288xf32> to vector<1x4x288xf32>
    tpu.vector_store %arg7[%c0_43, %c0_44, %c0_45], %59 {strides = array<i32>} : memref<1x4x288xf32, #tpu.memory_space<vmem>>, vector<1x4x288xf32>,
    return
  }
  func.func @transform_0(%arg0: i32, %arg1: i32, %arg2: i32) -> (i32, i32, i32) {
    %c0_i32 = arith.constant 0 : i32
    %c0_i32_0 = arith.constant 0 : i32
    %c0_i32_1 = arith.constant 0 : i32
    return %arg0, %c0_i32, %c0_i32_0 : i32, i32, i32
  }
  func.func @transform_1(%arg0: i32, %arg1: i32, %arg2: i32) -> (i32, i32) {
    %c0_i32 = arith.constant 0 : i32
    %c0_i32_0 = arith.constant 0 : i32
    %c0_i32_1 = arith.constant 0 : i32
    return %c0_i32, %c0_i32_0 : i32, i32
  }
  func.func @transform_2(%arg0: i32, %arg1: i32, %arg2: i32) -> (i32, i32, i32) {
    %c0_i32 = arith.constant 0 : i32
    %c0_i32_0 = arith.constant 0 : i32
    return %arg0, %arg1, %c0_i32 : i32, i32, i32
  }
  func.func @transform_3(%arg0: i32, %arg1: i32, %arg2: i32) -> (i32, i32) {
    %c0_i32 = arith.constant 0 : i32
    %c0_i32_0 = arith.constant 0 : i32
    %c0_i32_1 = arith.constant 0 : i32
    return %c0_i32, %c0_i32_0 : i32, i32
  }
  func.func @transform_4(%arg0: i32, %arg1: i32, %arg2: i32) -> (i32, i32, i32) {
    %c0_i32 = arith.constant 0 : i32
    %c0_i32_0 = arith.constant 0 : i32
    return %arg0, %arg1, %c0_i32 : i32, i32, i32
  }
}

</mosaic_0001>

<llo_original>
// kernel: tpu_custom_call.1
$region0: #{tpu_custom_call.1}
  #allocation0 [shape = 'u32[]', space=smem, size = 0x4, offset = 0x4, fixed_abs, tag = 'smem constant byte address 0x4 - core index']
  #allocation1 [shape = 'u32[144,128]{1,0:T(1,128)}', space=vmem, size = 0x12000, scoped, tag = 'internal scratch']
  #allocation2 [shape = 'f32[8,128]{1,0:T(8,128)}', space=vmem, size = 0x1000, scoped, tag = 'scratch operand']
  #allocation3 [shape = 'f32[72,288]{1,0:T(8,128)}', space=vmem, size = 0x1b000, scoped, tag = 'scratch operand']
  %s0 = inlined_call_operand.hbm [shape: f32[2,8,326], index: 0, kind: input, shape index: {}]
  %s1 = inlined_call_operand.hbm [shape: f32[4,72], index: 1, kind: input, shape index: {}]
  %s2 = inlined_call_operand.hbm [shape: f32[2,4,288], index: 2, kind: input, shape index: {}]
  %s3 = inlined_call_operand.vmem [shape: f32[1,288], index: 3, kind: input, shape index: {}]
  %s4 = inlined_call_operand.hbm [shape: f32[2,4,288], index: 4, kind: output, shape index: {}]
  %s5 = sld [smem:[#allocation0]]
  $region61: #{tpu_custom_call.1} parent=0
    _
  %s7 = ssub.s32 1, %s5
  %s8 = scalar_select 0, %s7, %s5
  $region1: #{tpu_custom_call.1} parent=0
    #allocation4 [shape = 'u8[24576]{0}', space=vmem, size = 0x6000, scoped, tag = 'input window, operand 0']
    #allocation5 [shape = 's32[2]{0}', space=sflag, size = 0x8, scoped, tag = 'scoped memory for tpu_custom_call.1']
    #allocation6 [shape = 's32[2]{0}', space=sflag, size = 0x8, scoped, tag = 'scoped memory for tpu_custom_call.1']
    #allocation7 [shape = 'u8[2048]{0}', space=vmem, size = 0x800, scoped, tag = 'input window, operand 1, single buffered']
    #allocation8 [shape = 's32[1]{0}', space=sflag, size = 0x4, scoped, tag = 'scoped memory for tpu_custom_call.1']
    #allocation9 [shape = 'u8[12288]{0}', space=vmem, size = 0x3000, scoped, tag = 'input window, operand 2']
    #allocation10 [shape = 'u8[12288]{0}', space=vmem, size = 0x3000, scoped, tag = 'output window, operand 0']
    %9 = vsyncpa [#allocation5], 0
    %s10 = scalar_lea.sflag [#allocation5], 1
    %11 = vsyncpa %s10, 0
    %12 = vsyncpa [#allocation8], 0
    %13 = vsyncpa [#allocation6], 0
    %s14 = scalar_lea.sflag [#allocation6], 1
    %15 = vsyncpa %s14, 0
    loop: start=0, step=1, limit=4
    $region2: #{tpu_custom_call.1} parent=1 // loop_pre_header
      _
    $region3: #{tpu_custom_call.1} parent=1 // loop_header
      %s17 = sphi 0, %s21
      %p18 = scmp.ge.s32.totalorder %s17, 4
      %s24 = sphi 0, %s43
      %s25 = sphi 0, %s39
      %s26 = sphi 0, %s35
      %s27 = sphi 0, %s24
      %s28 = sphi 0, %s25
      %s29 = sphi 0, %s26
      %s30 = sphi 0, %s27
      %s31 = sphi 0, %s28
      %s32 = sphi 0, %s29
      %s46 = sphi 0, %s48
      %s49 = sphi 0, %s46
      %s50 = sphi 0, %s49
      %s66 = sphi 0, %s50
      %s70 = sphi 0, %s70
      %s72 = sphi 0, %s70
      %s73 = sphi 0, %s72
      %s87 = sphi 0, %s73
      %s95 = sphi 0, %s97
      %s98 = sphi 0, %s95
      %s99 = sphi 0, %s98
      %s115 = sphi 0, %s99
      %s119 = sphi 0, %s119
      %s121 = sphi 0, %s119
      %s122 = sphi 0, %s121
      %s136 = sphi 0, %s122
      %s144 = sphi 0, %s146
      %s147 = sphi 0, %s144
      %s148 = sphi 0, %s147
      %s164 = sphi 0, %s148
    $region4: #{tpu_custom_call.1} parent=1 // loop_header_branch
      %20 = sbr.rel (%p18) target = $region8
    $region5: #{tpu_custom_call.1} parent=1 // loop_body
      %s22 = ssub.s32 %s17, 1
      %s23 = ssub.s32 %s17, 2
      %s33 = sadd.s32 1, %s26
      %p34 = scmp.ge.s32.totalorder %s33, 1
      %s35 = scalar_select %p34, 0, %s33
      %s36 = sadd.s32 1, %s25
      %s37 = scalar_select %p34, %s36, %s25
      %p38 = scmp.ge.s32.totalorder %s37, 1
      %s39 = scalar_select %p38, 0, %s37
      %s40 = sadd.s32 1, %s24
      %s41 = scalar_select %p38, %s40, %s24
      %p42 = scmp.ge.s32.totalorder %s41, 2
      %s43 = scalar_select %p42, 0, %s41
      %s44 = ssub.s32 %s24, %s43
      %p45 = scmp.eq.s32.totalorder %s44, 0
      %s47 = sadd.s32 %s46, 1
      %s48 = scalar_select %p45, %s46, %s47
      %p51 = pneg %p45
      %p52 = scmp.eq.s32.totalorder %s17, 1
      %p53 = por %p51, %p52
      %p54 = scmp.ne.s32.totalorder %s46, %s49
      %p55 = scmp.eq.s32.totalorder %s17, 0
      %p56 = por %p54, %p55
      %p57 = scmp.ne.s32.totalorder %s46, %s49
      %p58 = scmp.eq.s32.totalorder %s22, 1
      %p59 = por %p57, %p58
      %p60 = scmp.ne.s32.totalorder %s49, %s50
      %p61 = scmp.eq.s32.totalorder %s22, 0
      %p62 = por %p60, %p61
      %p63 = scmp.ne.s32.totalorder %s49, %s50
      %p64 = scmp.eq.s32.totalorder %s23, 1
      %p65 = por %p63, %p64
      %p67 = scmp.ne.s32.totalorder %s50, %s66
      %p68 = scmp.eq.s32.totalorder %s23, 0
      %p69 = por %p67, %p68
      %s71 = sadd.s32 %s70, 1
      %p74 = scmp.eq.s32.totalorder %s17, 1
      %p75 = scmp.ne.s32.totalorder %s70, %s72
      %p76 = scmp.eq.s32.totalorder %s17, 0
      %p77 = por %p75, %p76
      %p78 = scmp.ne.s32.totalorder %s70, %s72
      %p79 = scmp.eq.s32.totalorder %s22, 1
      %p80 = por %p78, %p79
      %p81 = scmp.ne.s32.totalorder %s72, %s73
      %p82 = scmp.eq.s32.totalorder %s22, 0
      %p83 = por %p81, %p82
      %p84 = scmp.ne.s32.totalorder %s72, %s73
      %p85 = scmp.eq.s32.totalorder %s23, 1
      %p86 = por %p84, %p85
      %p88 = scmp.ne.s32.totalorder %s73, %s87
      %p89 = scmp.eq.s32.totalorder %s23, 0
      %p90 = por %p88, %p89
      %s91 = ssub.s32 %s24, %s43
      %s92 = ssub.s32 %s25, %s39
      %s93 = sor.u32 %s91, %s92
      %p94 = scmp.eq.s32.totalorder %s93, 0
      %s96 = sadd.s32 %s95, 1
      %s97 = scalar_select %p94, %s95, %s96
      %p100 = pneg %p94
      %p101 = scmp.eq.s32.totalorder %s17, 1
      %p102 = por %p100, %p101
      %p103 = scmp.ne.s32.totalorder %s95, %s98
      %p104 = scmp.eq.s32.totalorder %s17, 0
      %p105 = por %p103, %p104
      %p106 = scmp.ne.s32.totalorder %s95, %s98
      %p107 = scmp.eq.s32.totalorder %s22, 1
      %p108 = por %p106, %p107
      %p109 = scmp.ne.s32.totalorder %s98, %s99
      %p110 = scmp.eq.s32.totalorder %s22, 0
      %p111 = por %p109, %p110
      %p112 = scmp.ne.s32.totalorder %s98, %s99
      %p113 = scmp.eq.s32.totalorder %s23, 1
      %p114 = por %p112, %p113
      %p116 = scmp.ne.s32.totalorder %s99, %s115
      %p117 = scmp.eq.s32.totalorder %s23, 0
      %p118 = por %p116, %p117
      %s120 = sadd.s32 %s119, 1
      %p123 = scmp.eq.s32.totalorder %s17, 1
      %p124 = scmp.ne.s32.totalorder %s119, %s121
      %p125 = scmp.eq.s32.totalorder %s17, 0
      %p126 = por %p124, %p125
      %p127 = scmp.ne.s32.totalorder %s119, %s121
      %p128 = scmp.eq.s32.totalorder %s22, 1
      %p129 = por %p127, %p128
      %p130 = scmp.ne.s32.totalorder %s121, %s122
      %p131 = scmp.eq.s32.totalorder %s22, 0
      %p132 = por %p130, %p131
      %p133 = scmp.ne.s32.totalorder %s121, %s122
      %p134 = scmp.eq.s32.totalorder %s23, 1
      %p135 = por %p133, %p134
      %p137 = scmp.ne.s32.totalorder %s122, %s136
      %p138 = scmp.eq.s32.totalorder %s23, 0
      %p139 = por %p137, %p138
      %s140 = ssub.s32 %s24, %s43
      %s141 = ssub.s32 %s25, %s39
      %s142 = sor.u32 %s140, %s141
      %p143 = scmp.eq.s32.totalorder %s142, 0
      %s145 = sadd.s32 %s144, 1
      %s146 = scalar_select %p143, %s144, %s145
      %p149 = pneg %p143
      %p150 = scmp.eq.s32.totalorder %s17, 1
      %p151 = por %p149, %p150
      %p152 = scmp.ne.s32.totalorder %s144, %s147
      %p153 = scmp.eq.s32.totalorder %s17, 0
      %p154 = por %p152, %p153
      %p155 = scmp.ne.s32.totalorder %s144, %s147
      %p156 = scmp.eq.s32.totalorder %s22, 1
      %p157 = por %p155, %p156
      %p158 = scmp.ne.s32.totalorder %s147, %s148
      %p159 = scmp.eq.s32.totalorder %s22, 0
      %p160 = por %p158, %p159
      %p161 = scmp.ne.s32.totalorder %s147, %s148
      %p162 = scmp.eq.s32.totalorder %s23, 1
      %p163 = por %p161, %p162
      %p165 = scmp.ne.s32.totalorder %s148, %s164
      %p166 = scmp.eq.s32.totalorder %s23, 0
      %p167 = por %p165, %p166
      %p168 = scmp.le.s32.totalorder 1, %s17
      %p169 = scmp.lt.s32.totalorder %s17, 3
      %p170 = pnand %p168, %p169
      %p171 = pneg %p170
      // Predicated region
      $region9: #{tpu_custom_call.1} parent=5 // pred_check
        _
      $region10: #{tpu_custom_call.1} parent=5 // pred_check_branch
        %173 = sbr.rel (%p170) target = $region12
      $region11: #{tpu_custom_call.1} parent=5 // pred_region
        %s174 = ssub.s32 %s17, 1
        // Predicated region
        $region13: #{tpu_custom_call.1} parent=11 // pred_check
          %p175 = pneg %p83
        $region14: #{tpu_custom_call.1} parent=11 // pred_check_branch
          %177 = sbr.rel (%p175) target = $region16
        $region15: #{tpu_custom_call.1} parent=11 // pred_region
          %s179 = ssub.s32 64, 64
          %180 = vsyncadd [#allocation8], %s179
          %s182 = sshll.u32 [#allocation7], 4
          %s183 = int_to_ptr.vmem [resolvable:$true] %s182
          %185 = dma.hbm_to_vmem [thread:$0]  %s1, 64, %s183, [#allocation8]
        $region16: #{tpu_custom_call.1} parent=11 // pred_fallthru
          _
        // Predicated region
        $region17: #{tpu_custom_call.1} parent=11 // pred_check
          %p186 = pneg %p132
        $region18: #{tpu_custom_call.1} parent=11 // pred_check_branch
          %188 = sbr.rel (%p186) target = $region20
        $region19: #{tpu_custom_call.1} parent=11 // pred_region
          _
        $region20: #{tpu_custom_call.1} parent=11 // pred_fallthru
          _
      $region12: #{tpu_custom_call.1} parent=5 // pred_fallthru
        _
      %p189 = scmp.lt.s32.totalorder %s17, 2
      // Predicated region
      $region21: #{tpu_custom_call.1} parent=5 // pred_check
        %p190 = pneg %p189
      $region22: #{tpu_custom_call.1} parent=5 // pred_check_branch
        %192 = sbr.rel (%p190) target = $region24
      $region23: #{tpu_custom_call.1} parent=5 // pred_region
        // Predicated region
        $region25: #{tpu_custom_call.1} parent=23 // pred_check
          %p193 = pneg %p56
        $region26: #{tpu_custom_call.1} parent=23 // pred_check_branch
          %195 = sbr.rel (%p193) target = $region28
        $region27: #{tpu_custom_call.1} parent=23 // pred_region
          %s196 = sand.u32 %s17, 1
          %s197 = scalar_lea.sflag [#allocation5], %s196
          %s198 = sand.u32 %s46, 1
          %s199 = smul.addr %s198, 24
          %s200 = scalar_lea.vmem [#allocation4], %s199
          %s202 = ssub.s32 384, 384
          %203 = vsyncadd %s197, %s202
          %s204 = smul.addr %s24, 3
          %s205 = smul.addr %s204, 128
          %s206 = scalar_lea.hbm %s0, %s205
          %s208 = sshll.u32 %s200, 4
          %s209 = int_to_ptr.vmem [resolvable:$true] %s208
          %211 = dma.hbm_to_vmem [thread:$0]  %s206, 384, %s209, %s197
        $region28: #{tpu_custom_call.1} parent=23 // pred_fallthru
          _
        // Predicated region
        $region29: #{tpu_custom_call.1} parent=23 // pred_check
          %p212 = pneg %p105
        $region30: #{tpu_custom_call.1} parent=23 // pred_check_branch
          %214 = sbr.rel (%p212) target = $region32
        $region31: #{tpu_custom_call.1} parent=23 // pred_region
          %s215 = sand.u32 %s17, 1
          %s216 = scalar_lea.sflag [#allocation5], %s215
          %s217 = sand.u32 %s95, 1
          %s218 = smul.addr %s217, 12
          %s219 = scalar_lea.vmem [#allocation9], %s218
          %s221 = ssub.s32 192, 192
          %222 = vsyncadd %s216, %s221
          %s223 = smul.addr %s25, 3
          %s224 = smul.addr %s24, 3
          %s225 = sadd.s32 %s223, %s224
          %s226 = smul.addr %s225, 64
          %s227 = scalar_lea.hbm %s2, %s226
          %s229 = sshll.u32 %s219, 4
          %s230 = int_to_ptr.vmem [resolvable:$true] %s229
          %232 = dma.hbm_to_vmem [thread:$0]  %s227, 192, %s230, %s216
        $region32: #{tpu_custom_call.1} parent=23 // pred_fallthru
          _
      $region24: #{tpu_custom_call.1} parent=5 // pred_fallthru
        _
      %p233 = scmp.le.s32.totalorder 1, %s17
      %p234 = scmp.lt.s32.totalorder %s17, 3
      %p235 = pnand %p233, %p234
      %p236 = pneg %p235
      // Predicated region
      $region33: #{tpu_custom_call.1} parent=5 // pred_check
        _
      $region34: #{tpu_custom_call.1} parent=5 // pred_check_branch
        %238 = sbr.rel (%p235) target = $region36
      $region35: #{tpu_custom_call.1} parent=5 // pred_region
        %s239 = ssub.s32 %s17, 1
        %s240 = sand.u32 %s22, 1
        %s241 = scalar_lea.sflag [#allocation5], %s240
        %s242 = sand.u32 %s49, 1
        %s243 = smul.addr %s242, 24
        %s244 = scalar_lea.vmem [#allocation4], %s243
        // Predicated region
        $region37: #{tpu_custom_call.1} parent=35 // pred_check
          %p245 = pneg %p62
        $region38: #{tpu_custom_call.1} parent=35 // pred_check_branch
          %247 = sbr.rel (%p245) target = $region40
        $region39: #{tpu_custom_call.1} parent=35 // pred_region
          %248 = dma.done %s241, 384
        $region40: #{tpu_custom_call.1} parent=35 // pred_fallthru
          _
        // Predicated region
        $region41: #{tpu_custom_call.1} parent=35 // pred_check
          %p249 = pneg %p83
        $region42: #{tpu_custom_call.1} parent=35 // pred_check_branch
          %251 = sbr.rel (%p249) target = $region44
        $region43: #{tpu_custom_call.1} parent=35 // pred_region
          %252 = dma.done [#allocation8], 64
        $region44: #{tpu_custom_call.1} parent=35 // pred_fallthru
          _
        %s253 = sand.u32 %s22, 1
        %s254 = scalar_lea.sflag [#allocation5], %s253
        %s255 = sand.u32 %s98, 1
        %s256 = smul.addr %s255, 12
        %s257 = scalar_lea.vmem [#allocation9], %s256
        // Predicated region
        $region45: #{tpu_custom_call.1} parent=35 // pred_check
          %p258 = pneg %p111
        $region46: #{tpu_custom_call.1} parent=35 // pred_check_branch
          %260 = sbr.rel (%p258) target = $region48
        $region47: #{tpu_custom_call.1} parent=35 // pred_region
          %261 = dma.done %s254, 192
        $region48: #{tpu_custom_call.1} parent=35 // pred_fallthru
          _
        %s262 = sand.u32 %s22, 1
        %s263 = scalar_lea.sflag [#allocation5], %s262
        %s264 = sand.u32 %s49, 1
        %s265 = smul.addr %s264, 24
        %s266 = scalar_lea.vmem [#allocation4], %s265
        %p267 = pneg %p62
        %p268 = pneg %p59
        %p269 = pneg %p83
        %p270 = pneg %p80
        %s271 = sand.u32 %s22, 1
        %s272 = scalar_lea.sflag [#allocation5], %s271
        %s273 = sand.u32 %s98, 1
        %s274 = smul.addr %s273, 12
        %s275 = scalar_lea.vmem [#allocation9], %s274
        %p276 = pneg %p111
        %p277 = pneg %p108
        %p278 = pneg %p132
        %p279 = pneg %p129
        %p280 = pneg %p160
        %p281 = pneg %p157
        %s282 = sand.u32 %s147, 1
        %s283 = scalar_lea.sflag [#allocation6], %s282
        %s284 = sand.u32 %s147, 1
        %s285 = smul.addr %s284, 12
        %s286 = scalar_lea.vmem [#allocation10], %s285
        %v287 = vld [vmem:[%s244] sm:$0xff]
        %v288 = vld [vmem:[%s244 + $0x8] sm:$0xff]
        %v289 = vld [vmem:[%s244 + $0x10] sm:$0xff]
        %290 = vst [vmem:[#allocation3] sm:$0xff] %v287
        %291 = vst [vmem:[#allocation3 + $0x8] sm:$0xff] %v288
        %vm292 = vcmask 261120
        %293 = vst.msk [vmem:[#allocation3 + $0x10] sm:$0xff] %vm292, %v289
        %v294 = vld [vmem:[%s244] sm:$0xff]
        %v295 = vld [vmem:[%s244 + $0x8] sm:$0xff]
        %v296 = vld [vmem:[%s244 + $0x10] sm:$0xff]
        %300 = vrot.lane.b32.xlu0 %v294, 127
        %v301 = vpop.permute.xlu0 %300
        %302 = vrot.lane.b32.xlu0 %v295, 127
        %v303 = vpop.permute.xlu0 %302
        %304 = vrot.lane.b32.xlu0 %v296, 127
        %v305 = vpop.permute.xlu0 %304
        %vm306 = vcmask 1039360
        %v307 = vsel %vm306, %v301, %v303
        %v308 = vsel %vm306, %v303, %v305
        %312 = vst [vmem:[#allocation3 + $0x18] sm:$0xff] %v307
        %313 = vst [vmem:[#allocation3 + $0x20] sm:$0xff] %v308
        %314 = vst.msk [vmem:[#allocation3 + $0x28] sm:$0xff] %vm292, %v305
        %v315 = vld [vmem:[%s244] sm:$0xff]
        %v316 = vld [vmem:[%s244 + $0x8] sm:$0xff]
        %v317 = vld [vmem:[%s244 + $0x10] sm:$0xff]
        %321 = vrot.lane.b32.xlu0 %v315, 126
        %v322 = vpop.permute.xlu0 %321
        %323 = vrot.lane.b32.xlu0 %v316, 126
        %v324 = vpop.permute.xlu0 %323
        %325 = vrot.lane.b32.xlu0 %v317, 126
        %v326 = vpop.permute.xlu0 %325
        %vm327 = vcmask 1031168
        %v328 = vsel %vm327, %v322, %v324
        %v329 = vsel %vm327, %v324, %v326
        %333 = vst [vmem:[#allocation3 + $0x30] sm:$0xff] %v328
        %334 = vst [vmem:[#allocation3 + $0x38] sm:$0xff] %v329
        %335 = vst.msk [vmem:[#allocation3 + $0x40] sm:$0xff] %vm292, %v326
        %v336 = vld [vmem:[%s244] sm:$0xff]
        %v337 = vld [vmem:[%s244 + $0x8] sm:$0xff]
        %v338 = vld [vmem:[%s244 + $0x10] sm:$0xff]
        %342 = vrot.lane.b32.xlu0 %v336, 110
        %v343 = vpop.permute.xlu0 %342
        %344 = vrot.lane.b32.xlu0 %v337, 110
        %v345 = vpop.permute.xlu0 %344
        %346 = vrot.lane.b32.xlu0 %v338, 110
        %v347 = vpop.permute.xlu0 %346
        %vm348 = vcmask 900096
        %v349 = vsel %vm348, %v343, %v345
        %v350 = vsel %vm348, %v345, %v347
        %354 = vst [vmem:[#allocation3 + $0x48] sm:$0xff] %v349
        %355 = vst [vmem:[#allocation3 + $0x50] sm:$0xff] %v350
        %356 = vst.msk [vmem:[#allocation3 + $0x58] sm:$0xff] %vm292, %v347
        %v357 = vld [vmem:[%s244] sm:$0xff]
        %v358 = vld [vmem:[%s244 + $0x8] sm:$0xff]
        %v359 = vld [vmem:[%s244 + $0x10] sm:$0xff]
        %363 = vrot.lane.b32.xlu0 %v357, 109
        %v364 = vpop.permute.xlu0 %363
        %365 = vrot.lane.b32.xlu0 %v358, 109
        %v366 = vpop.permute.xlu0 %365
        %367 = vrot.lane.b32.xlu0 %v359, 109
        %v368 = vpop.permute.xlu0 %367
        %vm369 = vcmask 891904
        %v370 = vsel %vm369, %v364, %v366
        %v371 = vsel %vm369, %v366, %v368
        %375 = vst [vmem:[#allocation3 + $0x60] sm:$0xff] %v370
        %376 = vst [vmem:[#allocation3 + $0x68] sm:$0xff] %v371
        %377 = vst.msk [vmem:[#allocation3 + $0x70] sm:$0xff] %vm292, %v368
        %v378 = vld [vmem:[%s244] sm:$0xff]
        %v379 = vld [vmem:[%s244 + $0x8] sm:$0xff]
        %v380 = vld [vmem:[%s244 + $0x10] sm:$0xff]
        %384 = vrot.lane.b32.xlu0 %v378, 108
        %v385 = vpop.permute.xlu0 %384
        %386 = vrot.lane.b32.xlu0 %v379, 108
        %v387 = vpop.permute.xlu0 %386
        %388 = vrot.lane.b32.xlu0 %v380, 108
        %v389 = vpop.permute.xlu0 %388
        %vm390 = vcmask 883712
        %v391 = vsel %vm390, %v385, %v387
        %v392 = vsel %vm390, %v387, %v389
        %396 = vst [vmem:[#allocation3 + $0x78] sm:$0xff] %v391
        %397 = vst [vmem:[#allocation3 + $0x80] sm:$0xff] %v392
        %398 = vst.msk [vmem:[#allocation3 + $0x88] sm:$0xff] %vm292, %v389
        %v399 = vld [vmem:[%s244] sm:$0xff]
        %v400 = vld [vmem:[%s244 + $0x8] sm:$0xff]
        %v401 = vld [vmem:[%s244 + $0x10] sm:$0xff]
        %405 = vrot.lane.b32.xlu0 %v399, 92
        %v406 = vpop.permute.xlu0 %405
        %407 = vrot.lane.b32.xlu0 %v400, 92
        %v408 = vpop.permute.xlu0 %407
        %409 = vrot.lane.b32.xlu0 %v401, 92
        %v410 = vpop.permute.xlu0 %409
        %vm411 = vcmask 752640
        %v412 = vsel %vm411, %v406, %v408
        %v413 = vsel %vm411, %v408, %v410
        %417 = vst [vmem:[#allocation3 + $0x90] sm:$0xff] %v412
        %418 = vst [vmem:[#allocation3 + $0x98] sm:$0xff] %v413
        %419 = vst.msk [vmem:[#allocation3 + $0xa0] sm:$0xff] %vm292, %v410
        %v420 = vld [vmem:[%s244] sm:$0xff]
        %v421 = vld [vmem:[%s244 + $0x8] sm:$0xff]
        %v422 = vld [vmem:[%s244 + $0x10] sm:$0xff]
        %426 = vrot.lane.b32.xlu0 %v420, 91
        %v427 = vpop.permute.xlu0 %426
        %428 = vrot.lane.b32.xlu0 %v421, 91
        %v429 = vpop.permute.xlu0 %428
        %430 = vrot.lane.b32.xlu0 %v422, 91
        %v431 = vpop.permute.xlu0 %430
        %vm432 = vcmask 744448
        %v433 = vsel %vm432, %v427, %v429
        %v434 = vsel %vm432, %v429, %v431
        %438 = vst [vmem:[#allocation3 + $0xa8] sm:$0xff] %v433
        %439 = vst [vmem:[#allocation3 + $0xb0] sm:$0xff] %v434
        %440 = vst.msk [vmem:[#allocation3 + $0xb8] sm:$0xff] %vm292, %v431
        %v441 = vld [vmem:[%s244] sm:$0xff]
        %v442 = vld [vmem:[%s244 + $0x8] sm:$0xff]
        %v443 = vld [vmem:[%s244 + $0x10] sm:$0xff]
        %447 = vrot.lane.b32.xlu0 %v441, 90
        %v448 = vpop.permute.xlu0 %447
        %449 = vrot.lane.b32.xlu0 %v442, 90
        %v450 = vpop.permute.xlu0 %449
        %451 = vrot.lane.b32.xlu0 %v443, 90
        %v452 = vpop.permute.xlu0 %451
        %vm453 = vcmask 736256
        %v454 = vsel %vm453, %v448, %v450
        %v455 = vsel %vm453, %v450, %v452
        %459 = vst [vmem:[#allocation3 + $0xc0] sm:$0xff] %v454
        %460 = vst [vmem:[#allocation3 + $0xc8] sm:$0xff] %v455
        %461 = vst.msk [vmem:[#allocation3 + $0xd0] sm:$0xff] %vm292, %v452
        %v462 = vld [vmem:[#allocation7] sm:$0xf]
        %v463 = vld [vmem:[#allocation3] sm:$0xff]
        %v464 = vld [vmem:[#allocation3 + $0x8] sm:$0xff]
        %v465 = vld [vmem:[#allocation3 + $0x10] sm:$0xff]
        %v466 = vld [vmem:[#allocation3 + $0x18] sm:$0xff]
        %v467 = vld [vmem:[#allocation3 + $0x20] sm:$0xff]
        %v468 = vld [vmem:[#allocation3 + $0x28] sm:$0xff]
        %v469 = vld [vmem:[#allocation3 + $0x30] sm:$0xff]
        %v470 = vld [vmem:[#allocation3 + $0x38] sm:$0xff]
        %v471 = vld [vmem:[#allocation3 + $0x40] sm:$0xff]
        %v472 = vld [vmem:[#allocation3 + $0x48] sm:$0xff]
        %v473 = vld [vmem:[#allocation3 + $0x50] sm:$0xff]
        %v474 = vld [vmem:[#allocation3 + $0x58] sm:$0xff]
        %v475 = vld [vmem:[#allocation3 + $0x60] sm:$0xff]
        %v476 = vld [vmem:[#allocation3 + $0x68] sm:$0xff]
        %v477 = vld [vmem:[#allocation3 + $0x70] sm:$0xff]
        %v478 = vld [vmem:[#allocation3 + $0x78] sm:$0xff]
        %v479 = vld [vmem:[#allocation3 + $0x80] sm:$0xff]
        %v480 = vld [vmem:[#allocation3 + $0x88] sm:$0xff]
        %v481 = vld [vmem:[#allocation3 + $0x90] sm:$0xff]
        %v482 = vld [vmem:[#allocation3 + $0x98] sm:$0xff]
        %v483 = vld [vmem:[#allocation3 + $0xa0] sm:$0xff]
        %v484 = vld [vmem:[#allocation3 + $0xa8] sm:$0xff]
        %v485 = vld [vmem:[#allocation3 + $0xb0] sm:$0xff]
        %v486 = vld [vmem:[#allocation3 + $0xb8] sm:$0xff]
        %v487 = vld [vmem:[#allocation3 + $0xc0] sm:$0xff]
        %v488 = vld [vmem:[#allocation3 + $0xc8] sm:$0xff]
        %v489 = vld [vmem:[#allocation3 + $0xd0] sm:$0xff]
        %vm490 = vcmask 588800
        %v492 = vsel %vm490, %v462, 0
        %494 = vmatprep.subr.mxu0 0.0
        %495 = vmatpush1.msra.mxu0 0.0
        %496 = vmatprep.subr.mxu0 0.0
        %497 = vmatpush1.msra.mxu0 0.0
        %498 = vmatprep.subr.mxu0 0.0
        %499 = vmatpush1.msra.mxu0 0.0
        %500 = vmatprep.subr.mxu0 0.0
        %501 = vmatpush1.msra.mxu0 0.0
        %502 = vmatprep.subr.mxu0 0.0
        %503 = vmatpush1.msra.mxu0 0.0
        %504 = vmatprep.subr.mxu0 0.0
        %505 = vmatpush1.msra.mxu0 0.0
        %506 = vmatprep.subr.mxu0 0.0
        %507 = vmatpush1.msra.mxu0 0.0
        %508 = vmatprep.subr.mxu0 %v488
        %509 = vmatpush1.msra.mxu0 %v487
        %510 = vmatprep.subr.mxu0 %v485
        %511 = vmatpush1.msra.mxu0 %v484
        %512 = vmatprep.subr.mxu0 %v482
        %513 = vmatpush1.msra.mxu0 %v481
        %514 = vmatprep.subr.mxu0 %v479
        %515 = vmatpush1.msra.mxu0 %v478
        %516 = vmatprep.subr.mxu0 %v476
        %517 = vmatpush1.msra.mxu0 %v475
        %518 = vmatprep.subr.mxu0 %v473
        %519 = vmatpush1.msra.mxu0 %v472
        %520 = vmatprep.subr.mxu0 %v470
        %521 = vmatpush1.msra.mxu0 %v469
        %522 = vmatprep.subr.mxu0 %v467
        %523 = vmatpush1.msra.mxu0 %v466
        %524 = vmatprep.subr.mxu0 %v464
        %525 = vmatpush1.msra.mxu0 %v463
        %526 = vmatprep.subr.mxu0 0.0
        %527 = vmatpush2.msra.mxu0 0.0
        %528 = vmatprep.subr.mxu0 0.0
        %529 = vmatpush2.msra.mxu0 0.0
        %530 = vmatprep.subr.mxu0 0.0
        %531 = vmatpush2.msra.mxu0 0.0
        %532 = vmatprep.subr.mxu0 0.0
        %533 = vmatpush2.msra.mxu0 0.0
        %534 = vmatprep.subr.mxu0 0.0
        %535 = vmatpush2.msra.mxu0 0.0
        %536 = vmatprep.subr.mxu0 0.0
        %537 = vmatpush2.msra.mxu0 0.0
        %538 = vmatprep.subr.mxu0 0.0
        %539 = vmatpush2.msra.mxu0 0.0
        %540 = vmatprep.subr.mxu0 0.0
        %541 = vmatpush2.msra.mxu0 0.0
        %542 = vmatprep.subr.mxu0 0.0
        %543 = vmatpush2.msra.mxu0 0.0
        %544 = vmatprep.subr.mxu0 0.0
        %545 = vmatpush2.msra.mxu0 0.0
        %546 = vmatprep.subr.mxu0 0.0
        %547 = vmatpush2.msra.mxu0 0.0
        %548 = vmatprep.subr.mxu0 0.0
        %549 = vmatpush2.msra.mxu0 0.0
        %550 = vmatprep.subr.mxu0 0.0
        %551 = vmatpush2.msra.mxu0 0.0
        %552 = vmatprep.subr.mxu0 0.0
        %553 = vmatpush2.msra.mxu0 0.0
        %554 = vmatprep.subr.mxu0 0.0
        %555 = vmatpush2.msra.mxu0 0.0
        %556 = vmatprep.subr.mxu0 0.0
        %557 = vmatpush2.msra.mxu0 0.0
        %558 = vmatprep.mubr.f32.mxu0 0.0
        %559 = vmatmul.mubr.f32.gmra.mxu0 %v492
        %v560 = vpop.f32.mrf.mxu0
        %v561 = vadd.f32 0.0, %v560
        %v562 = vpop.f32.mrf.mxu0
        %v563 = vadd.f32 0.0, %v562
        %564 = vdwg.mxu0
        %565 = vmatprep.subr.mxu0 0.0
        %566 = vmatpush1.msra.mxu0 0.0
        %567 = vmatprep.subr.mxu0 0.0
        %568 = vmatpush1.msra.mxu0 0.0
        %569 = vmatprep.subr.mxu0 0.0
        %570 = vmatpush1.msra.mxu0 0.0
        %571 = vmatprep.subr.mxu0 0.0
        %572 = vmatpush1.msra.mxu0 0.0
        %573 = vmatprep.subr.mxu0 0.0
        %574 = vmatpush1.msra.mxu0 0.0
        %575 = vmatprep.subr.mxu0 0.0
        %576 = vmatpush1.msra.mxu0 0.0
        %577 = vmatprep.subr.mxu0 0.0
        %578 = vmatpush1.msra.mxu0 0.0
        %579 = vmatprep.subr.mxu0 0.0
        %580 = vmatpush1.msra.mxu0 %v489
        %581 = vmatprep.subr.mxu0 0.0
        %582 = vmatpush1.msra.mxu0 %v486
        %583 = vmatprep.subr.mxu0 0.0
        %584 = vmatpush1.msra.mxu0 %v483
        %585 = vmatprep.subr.mxu0 0.0
        %586 = vmatpush1.msra.mxu0 %v480
        %587 = vmatprep.subr.mxu0 0.0
        %588 = vmatpush1.msra.mxu0 %v477
        %589 = vmatprep.subr.mxu0 0.0
        %590 = vmatpush1.msra.mxu0 %v474
        %591 = vmatprep.subr.mxu0 0.0
        %592 = vmatpush1.msra.mxu0 %v471
        %593 = vmatprep.subr.mxu0 0.0
        %594 = vmatpush1.msra.mxu0 %v468
        %595 = vmatprep.subr.mxu0 0.0
        %596 = vmatpush1.msra.mxu0 %v465
        %597 = vmatprep.subr.mxu0 0.0
        %598 = vmatpush2.msra.mxu0 0.0
        %599 = vmatprep.subr.mxu0 0.0
        %600 = vmatpush2.msra.mxu0 0.0
        %601 = vmatprep.subr.mxu0 0.0
        %602 = vmatpush2.msra.mxu0 0.0
        %603 = vmatprep.subr.mxu0 0.0
        %604 = vmatpush2.msra.mxu0 0.0
        %605 = vmatprep.subr.mxu0 0.0
        %606 = vmatpush2.msra.mxu0 0.0
        %607 = vmatprep.subr.mxu0 0.0
        %608 = vmatpush2.msra.mxu0 0.0
        %609 = vmatprep.subr.mxu0 0.0
        %610 = vmatpush2.msra.mxu0 0.0
        %611 = vmatprep.subr.mxu0 0.0
        %612 = vmatpush2.msra.mxu0 0.0
        %613 = vmatprep.subr.mxu0 0.0
        %614 = vmatpush2.msra.mxu0 0.0
        %615 = vmatprep.subr.mxu0 0.0
        %616 = vmatpush2.msra.mxu0 0.0
        %617 = vmatprep.subr.mxu0 0.0
        %618 = vmatpush2.msra.mxu0 0.0
        %619 = vmatprep.subr.mxu0 0.0
        %620 = vmatpush2.msra.mxu0 0.0
        %621 = vmatprep.subr.mxu0 0.0
        %622 = vmatpush2.msra.mxu0 0.0
        %623 = vmatprep.subr.mxu0 0.0
        %624 = vmatpush2.msra.mxu0 0.0
        %625 = vmatprep.subr.mxu0 0.0
        %626 = vmatpush2.msra.mxu0 0.0
        %627 = vmatprep.subr.mxu0 0.0
        %628 = vmatpush2.msra.mxu0 0.0
        %629 = vmatprep.mubr.f32.mxu0 0.0
        %630 = vmatmul.mubr.f32.gmra.mxu0 %v492
        %v631 = vpop.f32.mrf.mxu0
        %v632 = vadd.f32 0.0, %v631
        %v633 = vpop.f32.mrf.mxu0
        %634 = vdwg.mxu0
        %v635 = vld [vmem:[%s3] sm:$0x7]
        %v637 = vlaneseq
        %v638 = vshrl.u32 %v637, 7
        %v639 = vsub.s32 0, %v638
        %v640 = vrot.slane %v635, %v639
        %v641 = vlaneseq
        %v642 = vshrl.u32 %v641, 7
        %v643 = vsub.s32 1, %v642
        %v644 = vrot.slane %v635, %v643
        %v645 = vlaneseq
        %v646 = vshrl.u32 %v645, 7
        %v647 = vsub.s32 2, %v646
        %v648 = vrot.slane %v635, %v647
        %v652 = vmul.f32 %v561, %v640
        %v653 = vmul.f32 %v563, %v644
        %v654 = vmul.f32 %v632, %v648
        %vm655 = vcmask 1043456
        %v656 = vsel %vm655, %v652, 0.0
        %v657 = vsel %vm655, %v653, 0.0
        %v658 = vadd.f32 %v656, %v657
        %vm659 = vcmask 257024
        %v660 = vsel %vm659, %v654, 0.0
        %v661 = vadd.f32 %v658, %v660
        %662 = vadd.xlane.f32.xlu0 %v661
        %v663 = vpop.xlane.xlu0 %662
        %v664 = vmul.f32 %v663, 0.00390625
        %v665 = vsub.f32 %v561, %v664
        %v666 = vsub.f32 %v563, %v664
        %v667 = vsub.f32 %v632, %v664
        %v668 = vmul.f32 %v665, %v665
        %v669 = vmul.f32 %v666, %v666
        %v670 = vmul.f32 %v667, %v667
        %v671 = vmul.f32 %v668, %v640
        %v672 = vmul.f32 %v669, %v644
        %v673 = vmul.f32 %v670, %v648
        %v674 = vsel %vm655, %v671, 0.0
        %v675 = vsel %vm655, %v672, 0.0
        %v676 = vadd.f32 %v674, %v675
        %v677 = vsel %vm659, %v673, 0.0
        %v678 = vadd.f32 %v676, %v677
        %679 = vadd.xlane.f32.xlu0 %v678
        %v680 = vpop.xlane.xlu0 %679
        %v681 = vmul.f32 %v680, 0.00390625
        %v682 = vadd.f32 %v681, 1e-05
        %v683 = vrsqrt.pop %v682
        %v684 = vmul.f32 %v665, %v683
        %v685 = vmul.f32 %v666, %v683
        %v686 = vmul.f32 %v667, %v683
        %v687 = vld [vmem:[%s257] sm:$0xff]
        %v688 = vld [vmem:[%s257 + $0x8] sm:$0xf]
        %v690 = vcombine.high %v687, %v687
        %v692 = vadd.f32 %v684, %v687
        %v693 = vadd.f32 %v685, %v690
        %v694 = vadd.f32 %v686, %v688
        %v695 = vmul.f32 %v692, 0.2
        %v696 = vmul.f32 %v693, 0.2
        %v697 = vmul.f32 %v694, 0.2
        %v698 = vmax.f32 %v692, %v695
        %v699 = vmax.f32 %v693, %v696
        %v700 = vmax.f32 %v694, %v697
        %v703 = vcombine.low %v698, %v699
        %705 = vst [vmem:[%s286] sm:$0xff] %v703
        %706 = vst.msk [vmem:[%s286 + $0x8] sm:$0xf] %vm659, %v700
        %s707 = sand.u32 %s147, 1
        %s708 = scalar_lea.sflag [#allocation6], %s707
        %s709 = sand.u32 %s147, 1
        %s710 = smul.addr %s709, 12
        %s711 = scalar_lea.vmem [#allocation10], %s710
        // Predicated region
        $region49: #{tpu_custom_call.1} parent=35 // pred_check
          %p712 = pneg %p157
        $region50: #{tpu_custom_call.1} parent=35 // pred_check_branch
          %714 = sbr.rel (%p712) target = $region52
        $region51: #{tpu_custom_call.1} parent=35 // pred_region
          %s716 = ssub.s32 192, 192
          %717 = vsyncadd %s708, %s716
          %s718 = smul.addr %s28, 3
          %s719 = smul.addr %s27, 3
          %s720 = sadd.s32 %s718, %s719
          %s721 = smul.addr %s720, 64
          %s722 = scalar_lea.hbm %s4, %s721
          %s724 = sshll.u32 %s711, 4
          %s725 = int_to_ptr.vmem [resolvable:$true] %s724
          %727 = dma.vmem_to_hbm [thread:$0]  %s725, 192, %s722, %s708
        $region52: #{tpu_custom_call.1} parent=35 // pred_fallthru
          _
      $region36: #{tpu_custom_call.1} parent=5 // pred_fallthru
        _
      %p728 = scmp.le.s32.totalorder 2, %s17
      // Predicated region
      $region53: #{tpu_custom_call.1} parent=5 // pred_check
        %p729 = pneg %p728
      $region54: #{tpu_custom_call.1} parent=5 // pred_check_branch
        %731 = sbr.rel (%p729) target = $region56
      $region55: #{tpu_custom_call.1} parent=5 // pred_region
        %s732 = ssub.s32 %s17, 2
        // Predicated region
        $region57: #{tpu_custom_call.1} parent=55 // pred_check
          %p733 = pneg %p163
        $region58: #{tpu_custom_call.1} parent=55 // pred_check_branch
          %735 = sbr.rel (%p733) target = $region60
        $region59: #{tpu_custom_call.1} parent=55 // pred_region
          %s736 = sand.u32 %s148, 1
          %s737 = scalar_lea.sflag [#allocation6], %s736
          %s738 = sand.u32 %s148, 1
          %s739 = smul.addr %s738, 12
          %s740 = scalar_lea.vmem [#allocation10], %s739
          %741 = dma.done %s737, 192
        $region60: #{tpu_custom_call.1} parent=55 // pred_fallthru
          _
      $region56: #{tpu_custom_call.1} parent=5 // pred_fallthru
        _
    $region6: #{tpu_custom_call.1} parent=1 // loop_footer
      %s21 = sadd.s32 1, %s17
    $region7: #{tpu_custom_call.1} parent=1 // loop_footer_branch
      %16 = sbr.rel target = $region3
    $region8: #{tpu_custom_call.1} parent=1 // loop_exit
      _
    %742 = vsyncpa [#allocation5], 1
    %s743 = scalar_lea.sflag [#allocation5], 1
    %744 = vsyncpa %s743, 1
    %745 = vsyncpa [#allocation8], 1
    %746 = vsyncpa [#allocation6], 1
    %s747 = scalar_lea.sflag [#allocation6], 1
    %748 = vsyncpa %s747, 1

</llo_original>
